<compile_context>
chip_gen: v5e
topology: v5e:2x2
jax: 0.10.0
libtpu: 0.0.40
codegen_flags: <defaults>
</compile_context>

<pallas_src>
import functools
import math

import jax
import jax.numpy as jnp
import numpy as np
from jax import lax
from jax.experimental import pallas as pl
from jax.experimental.pallas import tpu as pltpu

_NEG_BIG = -1e30  # finite "minus infinity" for masked logits


def _sdpa_kernel(*refs, inv_temperature, has_mask):
    if has_mask:
        q_ref, k_ref, v_ref, mask_ref, o_ref, attn_ref = refs
    else:
        q_ref, k_ref, v_ref, o_ref, attn_ref = refs
        mask_ref = None

    q = q_ref[...]                      # (t_q, f)    bf16
    k = k_ref[...]                      # (t_k, f)    bf16
    v = v_ref[...]                      # (n, t_k, f) bf16
    n, t_k, _ = v.shape
    t_q = q.shape[0]

    # scores = (q @ k^T) / temperature; k-transpose folded into dot_general,
    # f32 accumulation on the MXU.
    s = lax.dot_general(q, k, (((1,), (1,)), ((), ())),
                        preferred_element_type=jnp.float32)
    s = s * inv_temperature             # (t_q, t_k), f32

    if mask_ref is not None:
        s = jnp.where(mask_ref[...] != 0, _NEG_BIG, s)

    # Numerically stable softmax: exp on the EUP, approx reciprocal for 1/sum.
    m = jnp.max(s, axis=-1, keepdims=True)
    p = jnp.exp(s - m)
    denom = jnp.sum(p, axis=-1, keepdims=True)
    p = p * pl.reciprocal(denom, approx=True)           # (t_q, t_k), f32
    attn_ref[...] = p

    # out[n, q, f] = sum_k p[q, k] * v[n, k, f] -- batched over n on the MXU,
    # emitted directly in the final (n, t_q, f) layout (no host transposes).
    p16 = jnp.broadcast_to(p.astype(v.dtype)[None], (n, t_q, t_k))
    o = lax.dot_general(p16, v, (((2,), (1,)), ((0,), (0,))),
                        preferred_element_type=jnp.float32)
    o_ref[...] = o.astype(o_ref.dtype)


@functools.lru_cache(maxsize=None)
def _build_sdpa(b, t_q, t_k, n, f, inv_temperature, has_mask):
    kernel = functools.partial(_sdpa_kernel, inv_temperature=inv_temperature,
                               has_mask=has_mask)
    in_specs = [
        pl.BlockSpec((None, t_q, f), lambda i: (i, 0, 0)),        # q
        pl.BlockSpec((None, t_k, f), lambda i: (i, 0, 0)),        # k
        pl.BlockSpec((None, n, t_k, f), lambda i: (i, 0, 0, 0)),  # v
    ]
    if has_mask:
        in_specs.append(pl.BlockSpec((None, t_q, t_k), lambda i: (i, 0, 0)))
    out_specs = (
        pl.BlockSpec((None, n, t_q, f), lambda i: (i, 0, 0, 0)),  # output
        pl.BlockSpec((None, t_q, t_k), lambda i: (i, 0, 0)),      # attn
    )
    return pl.pallas_call(
        kernel,
        out_shape=(jax.ShapeDtypeStruct((b, n, t_q, f), jnp.float32),
                   jax.ShapeDtypeStruct((b, t_q, t_k), jnp.float32)),
        grid=(b,),
        in_specs=in_specs,
        out_specs=out_specs,
        compiler_params=pltpu.CompilerParams(
            dimension_semantics=("parallel",)),  # v7x: batch across 2 TCs
    )


def scaled_dot_product_attention(q, k, v, temperature, mask=None):
    """Matches ScaledDotProductAttention.forward: returns (output, attn)."""
    b, n, t_v, f = v.shape
    t_q = q.shape[1]
    t_k = k.shape[1]
    assert t_v == t_k and q.shape[0] == b and k.shape[0] == b
    call = _build_sdpa(b, t_q, t_k, n, f, float(1.0 / temperature),
                       mask is not None)
    # bf16 MXU inputs; all accumulation / softmax math stays f32 in-kernel.
    qb = q.astype(jnp.bfloat16)
    kb = k.astype(jnp.bfloat16)
    vb = v.astype(jnp.bfloat16)
    if mask is not None:
        return call(qb, kb, vb, mask.astype(jnp.int32))
    return call(qb, kb, vb)


def sdpa_reference(q, k, v, temperature, mask=None):
    """Pure-JAX f32 reference of the PyTorch module (for the self-check)."""
    attn = jnp.einsum('bqd,bkd->bqk', q, k) / temperature
    if mask is not None:
        attn = jnp.where(mask, _NEG_BIG, attn)
    attn = jax.nn.softmax(attn, axis=2)
    out = jnp.einsum('bqk,bnkf->bnqf', attn, v)
    return out, attn


if __name__ == "__main__":
    b, n, t, f = 2, 4, 8, 16
    temperature = math.sqrt(f)

    key = jax.random.PRNGKey(0)
    kq, kk, kv = jax.random.split(key, 3)
    q = jax.random.normal(kq, (b, t, f), dtype=jnp.float32)
    k = jax.random.normal(kk, (b, t, f), dtype=jnp.float32)
    v = jax.random.normal(kv, (b, n, t, f), dtype=jnp.float32)
    causal = jnp.broadcast_to(
        jnp.triu(jnp.ones((t, t), dtype=bool), k=1)[None], (b, t, t))

    sdpa = jax.jit(scaled_dot_product_attention,
                   static_argnames=("temperature",))

    out_m, attn_m = sdpa(q, k, v, temperature=temperature, mask=causal)
    out_u, attn_u = sdpa(q, k, v, temperature=temperature)
    jax.block_until_ready((out_m, attn_m, out_u, attn_u))

    assert out_m.shape == (b, n, t, f) and attn_m.shape == (b, t, t)
    assert out_u.shape == (b, n, t, f) and attn_u.shape == (b, t, t)

    # Correctness vs pure-JAX f32 reference (bf16 MXU inputs -> loose tol).
    ref_out_m, ref_attn_m = sdpa_reference(q, k, v, temperature, causal)
    ref_out_u, ref_attn_u = sdpa_reference(q, k, v, temperature, None)
    np.testing.assert_allclose(attn_m, ref_attn_m, atol=5e-2, rtol=5e-2)
    np.testing.assert_allclose(out_m, ref_out_m, atol=8e-2, rtol=8e-2)
    np.testing.assert_allclose(attn_u, ref_attn_u, atol=5e-2, rtol=5e-2)
    np.testing.assert_allclose(out_u, ref_out_u, atol=8e-2, rtol=8e-2)

    print("KERNEL_OK")
</pallas_src>

<mosaic_0001>
module attributes {stable_mosaic.version = 11 : i64} {
  func.func @_sdpa_kernel(%arg0: i32, %arg1: memref<1x8x16xbf16, #tpu.memory_space<vmem>>, %arg2: memref<1x8x16xbf16, #tpu.memory_space<vmem>>, %arg3: memref<1x4x8x16xbf16, #tpu.memory_space<vmem>>, %arg4: memref<1x8x8xi32, #tpu.memory_space<vmem>>, %arg5: memref<1x4x8x16xf32, #tpu.memory_space<vmem>>, %arg6: memref<1x8x8xf32, #tpu.memory_space<vmem>>) attributes {dimension_semantics = [#tpu.dimension_semantics<parallel>], iteration_bounds = array<i64: 2>, scalar_prefetch = 0 : i64, scratch_operands = 0 : i64, tpu.core_type = #tpu.core_type<tc>, window_params = [{transform_indices = @transform_0, window_bounds = array<i64: 1, 8, 16>}, {transform_indices = @transform_1, window_bounds = array<i64: 1, 8, 16>}, {transform_indices = @transform_2, window_bounds = array<i64: 1, 4, 8, 16>}, {transform_indices = @transform_3, window_bounds = array<i64: 1, 8, 8>}, {transform_indices = @transform_4, window_bounds = array<i64: 1, 4, 8, 16>}, {transform_indices = @transform_5, window_bounds = array<i64: 1, 8, 8>}]} {
    %c0 = arith.constant 0 : index
    %c0_0 = arith.constant 0 : index
    %c0_1 = arith.constant 0 : index
    %0 = vector.load %arg1[%c0, %c0_0, %c0_1] : memref<1x8x16xbf16, #tpu.memory_space<vmem>>, vector<1x8x16xbf16>
    %1 = vector.shape_cast %0 : vector<1x8x16xbf16> to vector<8x16xbf16>
    %c0_2 = arith.constant 0 : index
    %c0_3 = arith.constant 0 : index
    %c0_4 = arith.constant 0 : index
    %2 = vector.load %arg2[%c0_2, %c0_3, %c0_4] : memref<1x8x16xbf16, #tpu.memory_space<vmem>>, vector<1x8x16xbf16>
    %3 = vector.shape_cast %2 : vector<1x8x16xbf16> to vector<8x16xbf16>
    %c0_5 = arith.constant 0 : index
    %c0_6 = arith.constant 0 : index
    %c0_7 = arith.constant 0 : index
    %c0_8 = arith.constant 0 : index
    %4 = vector.load %arg3[%c0_5, %c0_6, %c0_7, %c0_8] : memref<1x4x8x16xbf16, #tpu.memory_space<vmem>>, vector<1x4x8x16xbf16>
    %5 = vector.shape_cast %4 : vector<1x4x8x16xbf16> to vector<4x8x16xbf16>
    %cst = arith.constant dense<0.000000e+00> : vector<8x8xf32>
    %6 = tpu.matmul %1, %3, %cst {dimension_numbers = #tpu.dot_dimension_numbers<[1], [1], [0], [0], [0, 0, 1, 0], [], []>} : vector<8x16xbf16>, vector<8x16xbf16>, vector<8x8xf32> -> vector<8x8xf32>
    %cst_9 = arith.constant 2.500000e-01 : f32
    %7 = vector.broadcast %cst_9 : f32 to vector<8x8xf32>
    %8 = arith.mulf %6, %7 : vector<8x8xf32>
    %c0_10 = arith.constant 0 : index
    %c0_11 = arith.constant 0 : index
    %c0_12 = arith.constant 0 : index
    %9 = vector.load %arg4[%c0_10, %c0_11, %c0_12] : memref<1x8x8xi32, #tpu.memory_space<vmem>>, vector<1x8x8xi32>
    %10 = vector.shape_cast %9 : vector<1x8x8xi32> to vector<8x8xi32>
    %c0_i32 = arith.constant 0 : i32
    %11 = vector.broadcast %c0_i32 : i32 to vector<8x8xi32>
    %12 = arith.cmpi ne, %10, %11 : vector<8x8xi32>
    %cst_13 = arith.constant -1.000000e+30 : f32
    %13 = vector.broadcast %cst_13 : f32 to vector<8x8xf32>
    %14 = arith.select %12, %13, %8 : vector<8x8xi1>, vector<8x8xf32>
    %cst_14 = arith.constant dense<0xFF800000> : vector<8xf32>
    %15 = vector.multi_reduction <maximumf>, %14, %cst_14 [1] : vector<8x8xf32> to vector<8xf32>
    %16 = vector.shape_cast %15 : vector<8xf32> to vector<8x1xf32>
    %17 = vector.broadcast %16 : vector<8x1xf32> to vector<8x8xf32>
    %18 = arith.subf %14, %17 : vector<8x8xf32>
    %19 = math.exp %18 : vector<8x8xf32>
    %cst_15 = arith.constant dense<0.000000e+00> : vector<8xf32>
    %20 = vector.multi_reduction <add>, %19, %cst_15 [1] : vector<8x8xf32> to vector<8xf32>
    %21 = vector.shape_cast %20 : vector<8xf32> to vector<8x1xf32>
    %22 = tpu.reciprocal %21 {approx = true} : vector<8x1xf32> -> vector<8x1xf32>
    %23 = vector.broadcast %22 : vector<8x1xf32> to vector<8x8xf32>
    %24 = arith.mulf %19, %23 : vector<8x8xf32>
    %c0_16 = arith.constant 0 : index
    %c0_17 = arith.constant 0 : index
    %c0_18 = arith.constant 0 : index
    %25 = vector.load %arg6[%c0_16, %c0_17, %c0_18] : memref<1x8x8xf32, #tpu.memory_space<vmem>>, vector<1x8x8xf32>
    %26 = vector.shape_cast %25 : vector<1x8x8xf32> to vector<8x8xf32>
    %27 = vector.shape_cast %24 : vector<8x8xf32> to vector<1x8x8xf32>
    tpu.vector_store %arg6[%c0_16, %c0_17, %c0_18], %27 {strides = array<i32>} : memref<1x8x8xf32, #tpu.memory_space<vmem>>, vector<1x8x8xf32>,
    %28 = arith.truncf %24 : vector<8x8xf32> to vector<8x8xbf16>
    %29 = vector.shape_cast %28 : vector<8x8xbf16> to vector<1x8x8xbf16>
    %30 = vector.shape_cast %29 : vector<1x8x8xbf16> to vector<1x8x8xbf16>
    %31 = vector.broadcast %30 : vector<1x8x8xbf16> to vector<4x8x8xbf16>
    %cst_19 = arith.constant dense<0.000000e+00> : vector<4x8x16xf32>
    %32 = tpu.matmul %31, %5, %cst_19 {dimension_numbers = #tpu.dot_dimension_numbers<[2], [1], [1], [2], [0, 0, 0, 1, 1, 2], [0], [0]>} : vector<4x8x8xbf16>, vector<4x8x16xbf16>, vector<4x8x16xf32> -> vector<4x8x16xf32>
    %c0_20 = arith.constant 0 : index
    %c0_21 = arith.constant 0 : index
    %c0_22 = arith.constant 0 : index
    %c0_23 = arith.constant 0 : index
    %33 = vector.load %arg5[%c0_20, %c0_21, %c0_22, %c0_23] : memref<1x4x8x16xf32, #tpu.memory_space<vmem>>, vector<1x4x8x16xf32>
    %34 = vector.shape_cast %33 : vector<1x4x8x16xf32> to vector<4x8x16xf32>
    %35 = vector.shape_cast %32 : vector<4x8x16xf32> to vector<1x4x8x16xf32>
    tpu.vector_store %arg5[%c0_20, %c0_21, %c0_22, %c0_23], %35 {strides = array<i32>} : memref<1x4x8x16xf32, #tpu.memory_space<vmem>>, vector<1x4x8x16xf32>,
    return
  }
  func.func @transform_0(%arg0: i32) -> (i32, i32, i32) {
    %c0_i32 = arith.constant 0 : i32
    %c0_i32_0 = arith.constant 0 : i32
    %c0_i32_1 = arith.constant 0 : i32
    return %arg0, %c0_i32, %c0_i32_0 : i32, i32, i32
  }
  func.func @transform_1(%arg0: i32) -> (i32, i32, i32) {
    %c0_i32 = arith.constant 0 : i32
    %c0_i32_0 = arith.constant 0 : i32
    %c0_i32_1 = arith.constant 0 : i32
    return %arg0, %c0_i32, %c0_i32_0 : i32, i32, i32
  }
  func.func @transform_2(%arg0: i32) -> (i32, i32, i32, i32) {
    %c0_i32 = arith.constant 0 : i32
    %c0_i32_0 = arith.constant 0 : i32
    %c0_i32_1 = arith.constant 0 : i32
    %c0_i32_2 = arith.constant 0 : i32
    return %arg0, %c0_i32, %c0_i32_0, %c0_i32_1 : i32, i32, i32, i32
  }
  func.func @transform_3(%arg0: i32) -> (i32, i32, i32) {
    %c0_i32 = arith.constant 0 : i32
    %c0_i32_0 = arith.constant 0 : i32
    %c0_i32_1 = arith.constant 0 : i32
    return %arg0, %c0_i32, %c0_i32_0 : i32, i32, i32
  }
  func.func @transform_4(%arg0: i32) -> (i32, i32, i32, i32) {
    %c0_i32 = arith.constant 0 : i32
    %c0_i32_0 = arith.constant 0 : i32
    %c0_i32_1 = arith.constant 0 : i32
    %c0_i32_2 = arith.constant 0 : i32
    return %arg0, %c0_i32, %c0_i32_0, %c0_i32_1 : i32, i32, i32, i32
  }
  func.func @transform_5(%arg0: i32) -> (i32, i32, i32) {
    %c0_i32 = arith.constant 0 : i32
    %c0_i32_0 = arith.constant 0 : i32
    %c0_i32_1 = arith.constant 0 : i32
    return %arg0, %c0_i32, %c0_i32_0 : i32, i32, i32
  }
}

</mosaic_0001>

<llo_original>
// kernel: scaled_dot_product_attention.1
$region0: #{scaled_dot_product_attention.1}
  #allocation0 [shape = 'u32[]', space=smem, size = 0x4, offset = 0x4, fixed_abs, tag = 'smem constant byte address 0x4 - core index']
  #allocation1 [shape = 'u32[72,128]{1,0:T(1,128)}', space=vmem, size = 0x9000, scoped, tag = 'internal scratch']
  %s0 = inlined_call_operand.vmem [shape: bf16[2,8,16], index: 0, kind: input, shape index: {}]
  %s1 = inlined_call_operand.vmem [shape: bf16[2,8,16], index: 1, kind: input, shape index: {}]
  %s2 = inlined_call_operand.vmem [shape: bf16[2,4,8,16], index: 2, kind: input, shape index: {}]
  %s3 = inlined_call_operand.vmem [shape: s32[2,8,8], index: 3, kind: input, shape index: {}]
  %s4 = inlined_call_operand.hbm [shape: f32[2,4,8,16], index: 4, kind: output, shape index: {0}]
  %s5 = inlined_call_operand.hbm [shape: f32[2,8,8], index: 5, kind: output, shape index: {1}]
  %6 = xla_tuple %s4, %s5
  %s7 = sld [smem:[#allocation0]]
  $region57: #{scaled_dot_product_attention.1} parent=0
    _
  %s9 = ssub.s32 1, %s7
  %s10 = scalar_select 0, %s9, %s7
  $region1: #{scaled_dot_product_attention.1} parent=0
    #allocation2 [shape = 'u8[32768]{0}', space=vmem, size = 0x8000, scoped, tag = 'output window, operand 0']
    #allocation3 [shape = 's32[2]{0}', space=sflag, size = 0x8, scoped, tag = 'scoped memory for scaled_dot_product_attention.1']
    #allocation4 [shape = 'u8[8192]{0}', space=vmem, size = 0x2000, scoped, tag = 'output window, operand 1']
    #allocation5 [shape = 's32[2]{0}', space=sflag, size = 0x8, scoped, tag = 'scoped memory for scaled_dot_product_attention.1']
    %11 = vsyncpa [#allocation3], 0
    %s12 = scalar_lea.sflag [#allocation3], 1
    %13 = vsyncpa %s12, 0
    %14 = vsyncpa [#allocation5], 0
    %s15 = scalar_lea.sflag [#allocation5], 1
    %16 = vsyncpa %s15, 0
    loop: start=0, step=1, limit=4
    $region2: #{scaled_dot_product_attention.1} parent=1 // loop_pre_header
      _
    $region3: #{scaled_dot_product_attention.1} parent=1 // loop_header
      %s18 = sphi 0, %s22
      %p19 = scmp.ge.s32.totalorder %s18, 4
      %s28 = sphi 0, %s30
      %s31 = sphi 0, %s28
      %s32 = sphi 0, %s31
      %s48 = sphi 0, %s32
      %s54 = sphi 0, %s56
      %s57 = sphi 0, %s54
      %s58 = sphi 0, %s57
      %s74 = sphi 0, %s58
      %s80 = sphi 0, %s82
      %s83 = sphi 0, %s80
      %s84 = sphi 0, %s83
      %s100 = sphi 0, %s84
      %s106 = sphi 0, %s108
      %s109 = sphi 0, %s106
      %s110 = sphi 0, %s109
      %s126 = sphi 0, %s110
      %s132 = sphi 0, %s134
      %s135 = sphi 0, %s132
      %s136 = sphi 0, %s135
      %s152 = sphi 0, %s136
      %s158 = sphi 0, %s160
      %s161 = sphi 0, %s158
      %s162 = sphi 0, %s161
      %s178 = sphi 0, %s162
    $region4: #{scaled_dot_product_attention.1} parent=1 // loop_header_branch
      %21 = sbr.rel (%p19) target = $region8
    $region5: #{scaled_dot_product_attention.1} parent=1 // loop_body
      %s23 = ssub.s32 %s18, 1
      %s24 = ssub.s32 %s18, 2
      %s25 = sadd.s32 %s18, 1
      %s26 = ssub.s32 %s18, %s25
      %p27 = scmp.eq.s32.totalorder %s26, 0
      %s29 = sadd.s32 %s28, 1
      %s30 = scalar_select %p27, %s28, %s29
      %p33 = pneg %p27
      %p34 = scmp.eq.s32.totalorder %s18, 1
      %p35 = por %p33, %p34
      %p36 = scmp.ne.s32.totalorder %s28, %s31
      %p37 = scmp.eq.s32.totalorder %s18, 0
      %p38 = por %p36, %p37
      %p39 = scmp.ne.s32.totalorder %s28, %s31
      %p40 = scmp.eq.s32.totalorder %s23, 1
      %p41 = por %p39, %p40
      %p42 = scmp.ne.s32.totalorder %s31, %s32
      %p43 = scmp.eq.s32.totalorder %s23, 0
      %p44 = por %p42, %p43
      %p45 = scmp.ne.s32.totalorder %s31, %s32
      %p46 = scmp.eq.s32.totalorder %s24, 1
      %p47 = por %p45, %p46
      %p49 = scmp.ne.s32.totalorder %s32, %s48
      %p50 = scmp.eq.s32.totalorder %s24, 0
      %p51 = por %p49, %p50
      %s52 = ssub.s32 %s18, %s25
      %p53 = scmp.eq.s32.totalorder %s52, 0
      %s55 = sadd.s32 %s54, 1
      %s56 = scalar_select %p53, %s54, %s55
      %p59 = pneg %p53
      %p60 = scmp.eq.s32.totalorder %s18, 1
      %p61 = por %p59, %p60
      %p62 = scmp.ne.s32.totalorder %s54, %s57
      %p63 = scmp.eq.s32.totalorder %s18, 0
      %p64 = por %p62, %p63
      %p65 = scmp.ne.s32.totalorder %s54, %s57
      %p66 = scmp.eq.s32.totalorder %s23, 1
      %p67 = por %p65, %p66
      %p68 = scmp.ne.s32.totalorder %s57, %s58
      %p69 = scmp.eq.s32.totalorder %s23, 0
      %p70 = por %p68, %p69
      %p71 = scmp.ne.s32.totalorder %s57, %s58
      %p72 = scmp.eq.s32.totalorder %s24, 1
      %p73 = por %p71, %p72
      %p75 = scmp.ne.s32.totalorder %s58, %s74
      %p76 = scmp.eq.s32.totalorder %s24, 0
      %p77 = por %p75, %p76
      %s78 = ssub.s32 %s18, %s25
      %p79 = scmp.eq.s32.totalorder %s78, 0
      %s81 = sadd.s32 %s80, 1
      %s82 = scalar_select %p79, %s80, %s81
      %p85 = pneg %p79
      %p86 = scmp.eq.s32.totalorder %s18, 1
      %p87 = por %p85, %p86
      %p88 = scmp.ne.s32.totalorder %s80, %s83
      %p89 = scmp.eq.s32.totalorder %s18, 0
      %p90 = por %p88, %p89
      %p91 = scmp.ne.s32.totalorder %s80, %s83
      %p92 = scmp.eq.s32.totalorder %s23, 1
      %p93 = por %p91, %p92
      %p94 = scmp.ne.s32.totalorder %s83, %s84
      %p95 = scmp.eq.s32.totalorder %s23, 0
      %p96 = por %p94, %p95
      %p97 = scmp.ne.s32.totalorder %s83, %s84
      %p98 = scmp.eq.s32.totalorder %s24, 1
      %p99 = por %p97, %p98
      %p101 = scmp.ne.s32.totalorder %s84, %s100
      %p102 = scmp.eq.s32.totalorder %s24, 0
      %p103 = por %p101, %p102
      %s104 = ssub.s32 %s18, %s25
      %p105 = scmp.eq.s32.totalorder %s104, 0
      %s107 = sadd.s32 %s106, 1
      %s108 = scalar_select %p105, %s106, %s107
      %p111 = pneg %p105
      %p112 = scmp.eq.s32.totalorder %s18, 1
      %p113 = por %p111, %p112
      %p114 = scmp.ne.s32.totalorder %s106, %s109
      %p115 = scmp.eq.s32.totalorder %s18, 0
      %p116 = por %p114, %p115
      %p117 = scmp.ne.s32.totalorder %s106, %s109
      %p118 = scmp.eq.s32.totalorder %s23, 1
      %p119 = por %p117, %p118
      %p120 = scmp.ne.s32.totalorder %s109, %s110
      %p121 = scmp.eq.s32.totalorder %s23, 0
      %p122 = por %p120, %p121
      %p123 = scmp.ne.s32.totalorder %s109, %s110
      %p124 = scmp.eq.s32.totalorder %s24, 1
      %p125 = por %p123, %p124
      %p127 = scmp.ne.s32.totalorder %s110, %s126
      %p128 = scmp.eq.s32.totalorder %s24, 0
      %p129 = por %p127, %p128
      %s130 = ssub.s32 %s18, %s25
      %p131 = scmp.eq.s32.totalorder %s130, 0
      %s133 = sadd.s32 %s132, 1
      %s134 = scalar_select %p131, %s132, %s133
      %p137 = pneg %p131
      %p138 = scmp.eq.s32.totalorder %s18, 1
      %p139 = por %p137, %p138
      %p140 = scmp.ne.s32.totalorder %s132, %s135
      %p141 = scmp.eq.s32.totalorder %s18, 0
      %p142 = por %p140, %p141
      %p143 = scmp.ne.s32.totalorder %s132, %s135
      %p144 = scmp.eq.s32.totalorder %s23, 1
      %p145 = por %p143, %p144
      %p146 = scmp.ne.s32.totalorder %s135, %s136
      %p147 = scmp.eq.s32.totalorder %s23, 0
      %p148 = por %p146, %p147
      %p149 = scmp.ne.s32.totalorder %s135, %s136
      %p150 = scmp.eq.s32.totalorder %s24, 1
      %p151 = por %p149, %p150
      %p153 = scmp.ne.s32.totalorder %s136, %s152
      %p154 = scmp.eq.s32.totalorder %s24, 0
      %p155 = por %p153, %p154
      %s156 = ssub.s32 %s18, %s25
      %p157 = scmp.eq.s32.totalorder %s156, 0
      %s159 = sadd.s32 %s158, 1
      %s160 = scalar_select %p157, %s158, %s159
      %p163 = pneg %p157
      %p164 = scmp.eq.s32.totalorder %s18, 1
      %p165 = por %p163, %p164
      %p166 = scmp.ne.s32.totalorder %s158, %s161
      %p167 = scmp.eq.s32.totalorder %s18, 0
      %p168 = por %p166, %p167
      %p169 = scmp.ne.s32.totalorder %s158, %s161
      %p170 = scmp.eq.s32.totalorder %s23, 1
      %p171 = por %p169, %p170
      %p172 = scmp.ne.s32.totalorder %s161, %s162
      %p173 = scmp.eq.s32.totalorder %s23, 0
      %p174 = por %p172, %p173
      %p175 = scmp.ne.s32.totalorder %s161, %s162
      %p176 = scmp.eq.s32.totalorder %s24, 1
      %p177 = por %p175, %p176
      %p179 = scmp.ne.s32.totalorder %s162, %s178
      %p180 = scmp.eq.s32.totalorder %s24, 0
      %p181 = por %p179, %p180
      %p182 = scmp.le.s32.totalorder 1, %s18
      %p183 = scmp.lt.s32.totalorder %s18, 3
      %p184 = pnand %p182, %p183
      %p185 = pneg %p184
      // Predicated region
      $region9: #{scaled_dot_product_attention.1} parent=5 // pred_check
        _
      $region10: #{scaled_dot_product_attention.1} parent=5 // pred_check_branch
        %187 = sbr.rel (%p184) target = $region12
      $region11: #{scaled_dot_product_attention.1} parent=5 // pred_region
        %s188 = ssub.s32 %s18, 1
      $region12: #{scaled_dot_product_attention.1} parent=5 // pred_fallthru
        _
      %p189 = scmp.lt.s32.totalorder %s18, 2
      // Predicated region
      $region13: #{scaled_dot_product_attention.1} parent=5 // pred_check
        %p190 = pneg %p189
      $region14: #{scaled_dot_product_attention.1} parent=5 // pred_check_branch
        %192 = sbr.rel (%p190) target = $region16
      $region15: #{scaled_dot_product_attention.1} parent=5 // pred_region
        // Predicated region
        $region17: #{scaled_dot_product_attention.1} parent=15 // pred_check
          %p193 = pneg %p38
        $region18: #{scaled_dot_product_attention.1} parent=15 // pred_check_branch
          %195 = sbr.rel (%p193) target = $region20
        $region19: #{scaled_dot_product_attention.1} parent=15 // pred_region
          %p196 = scmp.lt.s32.totalorder %s18, 1
          %s197 = scalar_select %p196, %s18, 1
          %s198 = smul.addr %s197, 4
          %s199 = scalar_lea.vmem %s0, %s198
        $region20: #{scaled_dot_product_attention.1} parent=15 // pred_fallthru
          _
        // Predicated region
        $region21: #{scaled_dot_product_attention.1} parent=15 // pred_check
          %p200 = pneg %p64
        $region22: #{scaled_dot_product_attention.1} parent=15 // pred_check_branch
          %202 = sbr.rel (%p200) target = $region24
        $region23: #{scaled_dot_product_attention.1} parent=15 // pred_region
          %p203 = scmp.lt.s32.totalorder %s18, 1
          %s204 = scalar_select %p203, %s18, 1
          %s205 = smul.addr %s204, 4
          %s206 = scalar_lea.vmem %s1, %s205
        $region24: #{scaled_dot_product_attention.1} parent=15 // pred_fallthru
          _
        // Predicated region
        $region25: #{scaled_dot_product_attention.1} parent=15 // pred_check
          %p207 = pneg %p90
        $region26: #{scaled_dot_product_attention.1} parent=15 // pred_check_branch
          %209 = sbr.rel (%p207) target = $region28
        $region27: #{scaled_dot_product_attention.1} parent=15 // pred_region
          %p210 = scmp.lt.s32.totalorder %s18, 1
          %s211 = scalar_select %p210, %s18, 1
          %s212 = smul.addr %s211, 4
          %s213 = smul.addr %s212, 4
          %s214 = scalar_lea.vmem %s2, %s213
        $region28: #{scaled_dot_product_attention.1} parent=15 // pred_fallthru
          _
        // Predicated region
        $region29: #{scaled_dot_product_attention.1} parent=15 // pred_check
          %p215 = pneg %p116
        $region30: #{scaled_dot_product_attention.1} parent=15 // pred_check_branch
          %217 = sbr.rel (%p215) target = $region32
        $region31: #{scaled_dot_product_attention.1} parent=15 // pred_region
          %p218 = scmp.lt.s32.totalorder %s18, 1
          %s219 = scalar_select %p218, %s18, 1
          %s220 = smul.addr %s219, 8
          %s221 = scalar_lea.vmem %s3, %s220
        $region32: #{scaled_dot_product_attention.1} parent=15 // pred_fallthru
          _
      $region16: #{scaled_dot_product_attention.1} parent=5 // pred_fallthru
        _
      %p222 = scmp.le.s32.totalorder 1, %s18
      %p223 = scmp.lt.s32.totalorder %s18, 3
      %p224 = pnand %p222, %p223
      %p225 = pneg %p224
      // Predicated region
      $region33: #{scaled_dot_product_attention.1} parent=5 // pred_check
        _
      $region34: #{scaled_dot_product_attention.1} parent=5 // pred_check_branch
        %227 = sbr.rel (%p224) target = $region36
      $region35: #{scaled_dot_product_attention.1} parent=5 // pred_region
        %s228 = ssub.s32 %s18, 1
        %p229 = scmp.lt.s32.totalorder %s23, 1
        %s230 = scalar_select %p229, %s23, 1
        %s231 = smul.addr %s230, 4
        %s232 = scalar_lea.vmem %s0, %s231
        %p233 = pneg %p44
        %p234 = pneg %p41
        %p235 = scmp.lt.s32.totalorder %s23, 1
        %s236 = scalar_select %p235, %s23, 1
        %s237 = smul.addr %s236, 4
        %s238 = scalar_lea.vmem %s1, %s237
        %p239 = pneg %p70
        %p240 = pneg %p67
        %p241 = scmp.lt.s32.totalorder %s23, 1
        %s242 = scalar_select %p241, %s23, 1
        %s243 = smul.addr %s242, 4
        %s244 = smul.addr %s243, 4
        %s245 = scalar_lea.vmem %s2, %s244
        %p246 = pneg %p96
        %p247 = pneg %p93
        %p248 = scmp.lt.s32.totalorder %s23, 1
        %s249 = scalar_select %p248, %s23, 1
        %s250 = smul.addr %s249, 8
        %s251 = scalar_lea.vmem %s3, %s250
        %p252 = pneg %p122
        %p253 = pneg %p119
        %p254 = pneg %p148
        %p255 = pneg %p145
        %s256 = sand.u32 %s135, 1
        %s257 = scalar_lea.sflag [#allocation3], %s256
        %s258 = sand.u32 %s135, 1
        %s259 = smul.addr %s258, 32
        %s260 = scalar_lea.vmem [#allocation2], %s259
        %p261 = pneg %p174
        %p262 = pneg %p171
        %s263 = sand.u32 %s161, 1
        %s264 = scalar_lea.sflag [#allocation5], %s263
        %s265 = sand.u32 %s161, 1
        %s266 = smul.addr %s265, 8
        %s267 = scalar_lea.vmem [#allocation4], %s266
        %p268 = scmp.lt.s32.totalorder %s23, 1
        %s269 = scalar_select %p268, %s23, 1
        %s270 = smul.addr %s269, 4
        %s271 = scalar_lea.vmem %s0, %s270
        %p272 = scmp.lt.s32.totalorder %s23, 1
        %s273 = scalar_select %p272, %s23, 1
        %s274 = smul.addr %s273, 4
        %s275 = scalar_lea.vmem %s1, %s274
        %p276 = scmp.lt.s32.totalorder %s23, 1
        %s277 = scalar_select %p276, %s23, 1
        %s278 = smul.addr %s277, 4
        %s279 = smul.addr %s278, 4
        %s280 = scalar_lea.vmem %s2, %s279
        %p281 = scmp.lt.s32.totalorder %s23, 1
        %s282 = scalar_select %p281, %s23, 1
        %s283 = smul.addr %s282, 8
        %s284 = scalar_lea.vmem %s3, %s283
        %v286 = vld [vmem:[%s271] sm:$0xf]
        %v287 = vld [vmem:[%s275] sm:$0xf]
        %v288 = vld [vmem:[%s280] sm:$0xf]
        %v289 = vld [vmem:[%s280 + $0x4] sm:$0xf]
        %v290 = vld [vmem:[%s280 + $0x8] sm:$0xf]
        %v291 = vld [vmem:[%s280 + $0xc] sm:$0xf]
        %vm292 = vcmask 130048
        %v294 = vsel %vm292, %v286, 0
        %v297 = vsel %vm292, %v287, 0
        %299 = vmatpush.bf16.xpose.msra.mxu0 0
        %300 = vmatpush.bf16.xpose.msra.mxu0 0
        %301 = vmatpush.bf16.xpose.msra.mxu0 0
        %302 = vmatpush.bf16.xpose.msra.mxu0 0
        %303 = vmatpush.bf16.xpose.msra.mxu0 0
        %304 = vmatpush.bf16.xpose.msra.mxu0 0
        %305 = vmatpush.bf16.xpose.msra.mxu0 0
        %306 = vmatpush.bf16.xpose.msra.mxu0 %v297
        %307 = vmatmul.bf16.gmra.mxu0 %v294
        %v308 = vpop.f32.mrf.mxu0
        %v309 = vadd.f32 0.0, %v308
        %v310 = vpop.f32.mrf.mxu0
        %311 = vdwg.mxu0
        %v312 = vmul.f32 %v309, 0.25
        %v313 = vld [vmem:[%s284] sm:$0xff]
        %vm314 = vcmp.ne.s32.totalorder %v313, 0
        %v315 = vsel %vm314, -1e+30, %v312
        %vm316 = vcmask 64512
        %v317 = vsel %vm316, %v315, -inf
        %318 = vmax.xlane.f32.xlu0 %v317
        %v319 = vpop.xlane.xlu0 %318
        %v320 = vsub.f32 %v315, %v319
        %v321 = vmul.f32 %v320, 1.442695
        %v322 = vpow.pop %v321
        %v323 = vsel %vm316, %v322, 0.0
        %324 = vadd.xlane.f32.xlu0 %v323
        %v325 = vpop.xlane.xlu0 %324
        %v326 = vrcp.pop %v325
        %v327 = vmul.f32 %v322, %v326
        %328 = vst.msk [vmem:[%s267] sm:$0xff] %vm316, %v327
        %v329 = vpack.c.bf16 %v327, %v327
        %v331 = vsel %vm316, %v329, 0
        %vm333 = vcmask 1043456
        %v335 = vsel %vm333, %v288, 0
        %337 = vmatpush.bf16.msra.mxu0 0
        %338 = vmatpush.bf16.msra.mxu0 0
        %339 = vmatpush.bf16.msra.mxu0 0
        %340 = vmatpush.bf16.msra.mxu0 0
        %341 = vmatpush.bf16.msra.mxu0 0
        %342 = vmatpush.bf16.msra.mxu0 0
        %343 = vmatpush.bf16.msra.mxu0 0
        %344 = vmatpush.bf16.msra.mxu0 %v335
        %345 = vmatmul.bf16.gmra.mxu0 %v331
        %v346 = vpop.f32.mrf.mxu0
        %v347 = vadd.f32 0.0, %v346
        %v348 = vpop.f32.mrf.mxu0
        %349 = vdwg.mxu0
        %v351 = vsel %vm333, %v289, 0
        %353 = vmatpush.bf16.msra.mxu0 0
        %354 = vmatpush.bf16.msra.mxu0 0
        %355 = vmatpush.bf16.msra.mxu0 0
        %356 = vmatpush.bf16.msra.mxu0 0
        %357 = vmatpush.bf16.msra.mxu0 0
        %358 = vmatpush.bf16.msra.mxu0 0
        %359 = vmatpush.bf16.msra.mxu0 0
        %360 = vmatpush.bf16.msra.mxu0 %v351
        %361 = vmatmul.bf16.gmra.mxu0 %v331
        %v362 = vpop.f32.mrf.mxu0
        %v363 = vadd.f32 0.0, %v362
        %v364 = vpop.f32.mrf.mxu0
        %365 = vdwg.mxu0
        %v367 = vsel %vm333, %v290, 0
        %369 = vmatpush.bf16.msra.mxu0 0
        %370 = vmatpush.bf16.msra.mxu0 0
        %371 = vmatpush.bf16.msra.mxu0 0
        %372 = vmatpush.bf16.msra.mxu0 0
        %373 = vmatpush.bf16.msra.mxu0 0
        %374 = vmatpush.bf16.msra.mxu0 0
        %375 = vmatpush.bf16.msra.mxu0 0
        %376 = vmatpush.bf16.msra.mxu0 %v367
        %377 = vmatmul.bf16.gmra.mxu0 %v331
        %v378 = vpop.f32.mrf.mxu0
        %v379 = vadd.f32 0.0, %v378
        %v380 = vpop.f32.mrf.mxu0
        %381 = vdwg.mxu0
        %v383 = vsel %vm333, %v291, 0
        %385 = vmatpush.bf16.msra.mxu0 0
        %386 = vmatpush.bf16.msra.mxu0 0
        %387 = vmatpush.bf16.msra.mxu0 0
        %388 = vmatpush.bf16.msra.mxu0 0
        %389 = vmatpush.bf16.msra.mxu0 0
        %390 = vmatpush.bf16.msra.mxu0 0
        %391 = vmatpush.bf16.msra.mxu0 0
        %392 = vmatpush.bf16.msra.mxu0 %v383
        %393 = vmatmul.bf16.gmra.mxu0 %v331
        %v394 = vpop.f32.mrf.mxu0
        %v395 = vadd.f32 0.0, %v394
        %v396 = vpop.f32.mrf.mxu0
        %397 = vdwg.mxu0
        %398 = vst.msk [vmem:[%s260] sm:$0xff] %vm292, %v347
        %399 = vst.msk [vmem:[%s260 + $0x8] sm:$0xff] %vm292, %v363
        %400 = vst.msk [vmem:[%s260 + $0x10] sm:$0xff] %vm292, %v379
        %401 = vst.msk [vmem:[%s260 + $0x18] sm:$0xff] %vm292, %v395
        %s402 = sand.u32 %s135, 1
        %s403 = scalar_lea.sflag [#allocation3], %s402
        %s404 = sand.u32 %s135, 1
        %s405 = smul.addr %s404, 32
        %s406 = scalar_lea.vmem [#allocation2], %s405
        %s407 = sand.u32 %s161, 1
        %s408 = scalar_lea.sflag [#allocation5], %s407
        %s409 = sand.u32 %s161, 1
        %s410 = smul.addr %s409, 8
        %s411 = scalar_lea.vmem [#allocation4], %s410
        // Predicated region
        $region37: #{scaled_dot_product_attention.1} parent=35 // pred_check
          %p412 = pneg %p145
        $region38: #{scaled_dot_product_attention.1} parent=35 // pred_check_branch
          %414 = sbr.rel (%p412) target = $region40
        $region39: #{scaled_dot_product_attention.1} parent=35 // pred_region
          %416 = vsyncadd %s403, 0
          %s417 = smul.addr %s23, 4
          %s418 = smul.addr %s417, 8
          %s419 = scalar_lea.hbm %s4, %s418
          %s420 = sshll.u32 %s406, 4
          %s421 = int_to_ptr.vmem [resolvable:$true] %s420
          %s422 = sshll.u32 %s419, 4
          %s423 = int_to_ptr.hbm [resolvable:$true] %s422
          %428 = dma.vmem_to_hbm [thread:$0]  %s421, 512, %s423, %s403, 128, 128, 8
        $region40: #{scaled_dot_product_attention.1} parent=35 // pred_fallthru
          _
        // Predicated region
        $region41: #{scaled_dot_product_attention.1} parent=35 // pred_check
          %p429 = pneg %p171
        $region42: #{scaled_dot_product_attention.1} parent=35 // pred_check_branch
          %431 = sbr.rel (%p429) target = $region44
        $region43: #{scaled_dot_product_attention.1} parent=35 // pred_region
          %433 = vsyncadd %s408, 0
          %s434 = smul.addr %s23, 8
          %s435 = scalar_lea.hbm %s5, %s434
          %s437 = sshll.u32 %s411, 4
          %s438 = int_to_ptr.vmem [resolvable:$true] %s437
          %s439 = sshll.u32 %s435, 4
          %s440 = int_to_ptr.hbm [resolvable:$true] %s439
          %442 = dma.vmem_to_hbm [thread:$0]  %s438, 128, %s440, %s408
        $region44: #{scaled_dot_product_attention.1} parent=35 // pred_fallthru
          _
      $region36: #{scaled_dot_product_attention.1} parent=5 // pred_fallthru
        _
      %p443 = scmp.le.s32.totalorder 2, %s18
      // Predicated region
      $region45: #{scaled_dot_product_attention.1} parent=5 // pred_check
        %p444 = pneg %p443
      $region46: #{scaled_dot_product_attention.1} parent=5 // pred_check_branch
        %446 = sbr.rel (%p444) target = $region48
      $region47: #{scaled_dot_product_attention.1} parent=5 // pred_region
        %s447 = ssub.s32 %s18, 2
        // Predicated region
        $region49: #{scaled_dot_product_attention.1} parent=47 // pred_check
          %p448 = pneg %p151
        $region50: #{scaled_dot_product_attention.1} parent=47 // pred_check_branch
          %450 = sbr.rel (%p448) target = $region52
        $region51: #{scaled_dot_product_attention.1} parent=47 // pred_region
          %s451 = sand.u32 %s136, 1
          %s452 = scalar_lea.sflag [#allocation3], %s451
          %s453 = sand.u32 %s136, 1
          %s454 = smul.addr %s453, 32
          %s455 = scalar_lea.vmem [#allocation2], %s454
          %457 = dma.done %s452, 512
        $region52: #{scaled_dot_product_attention.1} parent=47 // pred_fallthru
          _
        // Predicated region
        $region53: #{scaled_dot_product_attention.1} parent=47 // pred_check
          %p458 = pneg %p177
        $region54: #{scaled_dot_product_attention.1} parent=47 // pred_check_branch
          %460 = sbr.rel (%p458) target = $region56
        $region55: #{scaled_dot_product_attention.1} parent=47 // pred_region
          %s461 = sand.u32 %s162, 1
          %s462 = scalar_lea.sflag [#allocation5], %s461
          %s463 = sand.u32 %s162, 1
          %s464 = smul.addr %s463, 8
          %s465 = scalar_lea.vmem [#allocation4], %s464
          %467 = dma.done %s462, 128
        $region56: #{scaled_dot_product_attention.1} parent=47 // pred_fallthru
          _
      $region48: #{scaled_dot_product_attention.1} parent=5 // pred_fallthru
        _
    $region6: #{scaled_dot_product_attention.1} parent=1 // loop_footer
      %s22 = sadd.s32 1, %s18
    $region7: #{scaled_dot_product_attention.1} parent=1 // loop_footer_branch
      %17 = sbr.rel target = $region3
    $region8: #{scaled_dot_product_attention.1} parent=1 // loop_exit
      _
    %468 = vsyncpa [#allocation3], 1
    %s469 = scalar_lea.sflag [#allocation3], 1
    %470 = vsyncpa %s469, 1
    %471 = vsyncpa [#allocation5], 1
    %s472 = scalar_lea.sflag [#allocation5], 1
    %473 = vsyncpa %s472, 1

</llo_original>
